<compile_context>
chip_gen: v5e
topology: v5e:2x2
jax: 0.10.0
libtpu: 0.0.40
codegen_flags: <defaults>
</compile_context>

<pallas_src>
import functools

import jax
import jax.numpy as jnp
import numpy as np
from jax import lax
from jax.experimental import pallas as pl
from jax.experimental.pallas import tpu as pltpu

LANE = 128  # lane width / padded feature width for latent, out_dim, hidden


def _round_up(x, m):
    return ((x + m - 1) // m) * m


# ----------------------------- Pallas kernel --------------------------------
def regressor_kernel(
    # inputs
    node_feat_ref, edge_feat_ref, n2n_ref, e2n_ref, subg_ref, labels_ref, pk_ref,
    # output (single lane-dense slab)
    out_ref,
    *, max_lv: int, n_graphs: int, g_pad: int, f_ne_p: int,
    off_wne: int, off_convw: int, off_outw: int, off_h1w: int,
    off_h2w: int, off_bias: int,
):
    f32 = jnp.float32
    dot = functools.partial(jnp.dot, preferred_element_type=f32)
    relu = lambda x: jnp.maximum(x, 0.0)

    node_feat = node_feat_ref[...]                 # [N, f_ne_p] (cols [0,f_node) real)
    edge_feat = edge_feat_ref[...]                 # [E, f_ne_p] (cols [f_node_p,...) real)
    # 0/1 operators arrive as bf16 (exact for {0,1}); cast in-register for f32 compute
    n2n = n2n_ref[...].astype(f32)                 # [N, N]
    e2n = e2n_ref[...].astype(f32)                 # [N, E]
    subg = subg_ref[...].astype(f32)               # [g_pad, N]
    labels = labels_ref[...]                       # [g_pad, 128] (col 0 real)

    # ---- one-time parameter loads from the cached packed slab (static slices) ----
    w_ne = pk_ref[off_wne:off_wne + f_ne_p, :]     # [f_node_p+f_edge_p, 128]
    conv_w = pk_ref[off_convw:off_convw + LANE, :]
    out_w = pk_ref[off_outw:off_outw + LANE, :]
    h1_w = pk_ref[off_h1w:off_h1w + LANE, :]
    h2_w = pk_ref[off_h2w:off_h2w + LANE, :]       # col 0 real
    b_n2l = pk_ref[off_bias + 0:off_bias + 1, :]
    b_e2l = pk_ref[off_bias + 1:off_bias + 2, :]
    conv_b = pk_ref[off_bias + 2:off_bias + 3, :]
    out_b = pk_ref[off_bias + 3:off_bias + 4, :]
    h1_b = pk_ref[off_bias + 4:off_bias + 5, :]
    h2_b = pk_ref[off_bias + 5:off_bias + 6, :]

    # ---- EmbedMeanField.mean_field ----
    # Edge path pooled first (contracts in the narrow F_edge space), then the
    # node and edge projections are fused into ONE MXU push: node features and
    # pooled edge features live in disjoint column blocks, so a simple add
    # followed by a single [N, f_ne_p] x [f_ne_p, 128] matmul is exact.
    pooled_edge = dot(e2n, edge_feat)                               # [N, f_ne_p]
    deg = jnp.sum(e2n, axis=1, keepdims=True)                       # [N, 1]
    ne = node_feat + pooled_edge                                    # disjoint cols
    input_message = dot(ne, w_ne) + b_n2l + deg * b_e2l             # [N, 128]

    cur = relu(input_message)

    # hoisted out of the unrolled loop: conv bias + skip term folded once
    n_nodes = n2n.shape[0]
    base = input_message + jnp.broadcast_to(conv_b, (n_nodes, LANE))
    for _ in range(max_lv):                                         # static unroll
        cur = relu(dot(dot(n2n, cur), conv_w) + base)

    reluact = relu(dot(cur, out_w) + out_b)                         # [N, 128]
    embed = relu(dot(subg, reluact))                                # [g_pad, 128]

    # ---- MLPRegression ----
    h1 = relu(dot(embed, h1_w) + h1_b)                              # [g_pad, 128]
    pred = dot(h1, h2_w) + h2_b                                     # [g_pad, 128], col 0 valid

    # losses over the valid graph rows only (padded lanes of pred/labels are 0)
    row = lax.broadcasted_iota(jnp.int32, pred.shape, 0)
    diff = jnp.where(row < n_graphs, pred - labels, 0.0)
    mse = jnp.sum(diff * diff) / n_graphs
    mae = jnp.sum(jnp.abs(diff)) / n_graphs

    # ---- lane-dense output slab ----
    # rows [0, g_pad): padded pred (col 0 meaningful)
    # row  g_pad    : mae broadcast ; row g_pad+1 : mse broadcast
    out_ref[0:g_pad, :] = pred
    loss_row = lax.broadcasted_iota(jnp.int32, (8, LANE), 0)
    out_ref[g_pad:g_pad + 8, :] = jnp.where(
        loss_row == 0, mae, jnp.where(loss_row == 1, mse, 0.0)).astype(f32)


# ------------------------------ wrapper --------------------------------------
def make_regressor_forward(params, max_lv=3):
    """Packs the parameter slab ONCE and returns a jitted forward()."""
    (w_n2l, b_n2l, w_e2l, b_e2l, conv_w, conv_b,
     out_w, out_b, h1_w, h1_b, h2_w, h2_b) = params

    f_node = w_n2l.shape[0]
    f_edge = w_e2l.shape[0]
    latent_dim = conv_w.shape[0]
    out_dim = out_w.shape[1]
    hidden = h1_w.shape[1]
    assert max(latent_dim, out_dim, hidden, f_node, f_edge) <= LANE

    f_node_p = _round_up(max(f_node, 8), 8)
    f_edge_p = _round_up(max(f_edge, 8), 8)
    f_ne_p = f_node_p + f_edge_p

    def pad2(a, rows):
        r, c = a.shape
        return jnp.pad(a, ((0, rows - r), (0, LANE - c))).astype(jnp.float32)

    biases = jnp.concatenate(
        [pad2(b, 1) for b in (b_n2l, b_e2l, conv_b, out_b, h1_b, h2_b)], axis=0)
    biases = jnp.pad(biases, ((0, 8 - biases.shape[0]), (0, 0)))

    blocks = [
        jnp.concatenate([pad2(w_n2l, f_node_p), pad2(w_e2l, f_edge_p)], axis=0),
        pad2(conv_w, LANE),      # off_convw
        pad2(out_w, LANE),       # off_outw
        pad2(h1_w, LANE),        # off_h1w
        pad2(h2_w, LANE),        # off_h2w
        biases,                  # off_bias
    ]
    offs, cur = [], 0
    for blk in blocks:
        offs.append(cur)
        cur += blk.shape[0]
    pk = jnp.concatenate(blocks, axis=0)     # [K, 128] — packed ONCE, cached
    off_wne, off_convw, off_outw, off_h1w, off_h2w, off_bias = offs

    @jax.jit
    def forward(node_feat, edge_feat, n2n, e2n, subg, labels):
        n_graphs, n_nodes = subg.shape
        n_edges = edge_feat.shape[0]
        g_pad = _round_up(max(n_graphs, 8), 8)

        # per-batch padding (node feats in cols [0,f_node), edge feats in
        # cols [f_node_p, f_node_p+f_edge) of the shared f_ne_p width)
        node_feat_p = jnp.pad(node_feat.astype(jnp.float32),
                              ((0, 0), (0, f_ne_p - f_node)))
        edge_feat_p = jnp.pad(edge_feat.astype(jnp.float32),
                              ((0, 0), (f_node_p, f_edge_p - f_edge)))
        subg_p = jnp.pad(subg, ((0, g_pad - n_graphs), (0, 0)))
        labels_p = jnp.pad(labels.astype(jnp.float32),
                           ((0, g_pad - n_graphs), (0, LANE - labels.shape[1])))

        # 0/1 operators downcast to bf16 (exact) — halves HBM/VMEM bytes.
        n2n_b = n2n.astype(jnp.bfloat16)
        e2n_b = e2n.astype(jnp.bfloat16)
        subg_b = subg_p.astype(jnp.bfloat16)

        ins = (node_feat_p, edge_feat_p, n2n_b, e2n_b, subg_b, labels_p, pk)
        in_bytes = sum(int(np.prod(a.shape)) * a.dtype.itemsize for a in ins)
        out_bytes = (g_pad + 8) * LANE * 4
        flops = 2 * (
            n_nodes * n_edges * f_ne_p                       # e2n @ edge_feat
            + n_nodes * f_ne_p * LANE                        # fused input proj
            + max_lv * (n_nodes * n_nodes * LANE             # n2n spmm
                        + n_nodes * LANE * LANE)             # conv
            + n_nodes * LANE * LANE                          # out proj
            + g_pad * n_nodes * LANE                         # subgraph pool
            + 2 * g_pad * LANE * LANE)                       # MLP h1 + h2
        # scoped-VMEM limit sized to the actual resident set (+headroom);
        # matters most on v5e whose default scoped limit is only 16 MiB.
        vmem_limit = int(min(48 * 2 ** 20,
                             max(8 * 2 ** 20,
                                 2 * (in_bytes + out_bytes) + (1 << 20))))

        kernel = functools.partial(
            regressor_kernel, max_lv=max_lv, n_graphs=n_graphs, g_pad=g_pad,
            f_ne_p=f_ne_p, off_wne=off_wne, off_convw=off_convw,
            off_outw=off_outw, off_h1w=off_h1w, off_h2w=off_h2w,
            off_bias=off_bias)

        vmem = lambda: pl.BlockSpec(memory_space=pltpu.MemorySpace.VMEM)
        out = pl.pallas_call(
            kernel,
            out_shape=jax.ShapeDtypeStruct((g_pad + 8, LANE), jnp.float32),
            in_specs=[vmem() for _ in range(len(ins))],
            out_specs=vmem(),
            compiler_params=pltpu.CompilerParams(vmem_limit_bytes=vmem_limit),
            cost_estimate=pl.CostEstimate(
                flops=flops, transcendentals=0,
                bytes_accessed=in_bytes + out_bytes),
        )(*ins)

        pred = out[:n_graphs, 0:1]
        mae = out[g_pad, 0]
        mse = out[g_pad + 1, 0]
        return pred, mae, mse

    return forward


# --------------------------- param initialization ----------------------------
def glorot_uniform(key, in_dim, out_dim):
    limit = np.sqrt(6.0 / (in_dim + out_dim))
    return jax.random.uniform(key, (in_dim, out_dim), jnp.float32, -limit, limit)


def init_params(key, num_node_feats, num_edge_feats, latent_dim, out_dim, hidden):
    ks = jax.random.split(key, 6)
    # nn.Linear biases are zeroed by weights_init (_param_init)
    w_n2l = glorot_uniform(ks[0], num_node_feats, latent_dim)
    b_n2l = jnp.zeros((1, latent_dim), jnp.float32)
    w_e2l = glorot_uniform(ks[1], num_edge_feats, latent_dim)
    b_e2l = jnp.zeros((1, latent_dim), jnp.float32)
    conv_w = glorot_uniform(ks[2], latent_dim, latent_dim)
    conv_b = jnp.zeros((1, latent_dim), jnp.float32)
    out_w = glorot_uniform(ks[3], latent_dim, out_dim)
    out_b = jnp.zeros((1, out_dim), jnp.float32)
    h1_w = glorot_uniform(ks[4], out_dim, hidden)
    h1_b = jnp.zeros((1, hidden), jnp.float32)
    h2_w = glorot_uniform(ks[5], hidden, 1)
    h2_b = jnp.zeros((1, 1), jnp.float32)
    return (w_n2l, b_n2l, w_e2l, b_e2l, conv_w, conv_b,
            out_w, out_b, h1_w, h1_b, h2_w, h2_b)


# ------------------------------ pure-JAX ref ----------------------------------
def regressor_ref(node_feat, edge_feat, n2n, e2n, subg, labels, params, max_lv=3):
    (w_n2l, b_n2l, w_e2l, b_e2l, conv_w, conv_b,
     out_w, out_b, h1_w, h1_b, h2_w, h2_b) = params
    msg = node_feat @ w_n2l + b_n2l
    msg = msg + e2n @ (edge_feat @ w_e2l + b_e2l)
    cur = jax.nn.relu(msg)
    for _ in range(max_lv):
        cur = jax.nn.relu((n2n @ cur) @ conv_w + conv_b + msg)
    embed = jax.nn.relu(subg @ jax.nn.relu(cur @ out_w + out_b))
    h1 = jax.nn.relu(embed @ h1_w + h1_b)
    pred = h1 @ h2_w + h2_b
    return pred, jnp.mean(jnp.abs(pred - labels)), jnp.mean((pred - labels) ** 2)


# ---------------------------------- main --------------------------------------
if __name__ == "__main__":
    key = jax.random.PRNGKey(0)

    # hyper-params (cmd_args / MOLLIB stand-ins)
    NUM_NODE_FEATS = 8
    NUM_EDGE_FEATS = 4
    LATENT_DIM = 32
    OUT_DIM = 32
    HIDDEN = 32
    MAX_LV = 3

    # synthetic batch of 2 graphs, 16 nodes, 24 directed edges total
    N_GRAPHS, N_NODES, N_EDGES = 2, 16, 24

    k_feat, k_edge, k_adj, k_e2n, k_lbl, k_par = jax.random.split(key, 6)

    node_feat = jax.random.normal(k_feat, (N_NODES, NUM_NODE_FEATS), jnp.float32)
    edge_feat = jax.random.normal(k_edge, (N_EDGES, NUM_EDGE_FEATS), jnp.float32)

    # dense stand-ins for the sparse operators S2VLIB.PrepareMeanField builds
    n2n = (jax.random.uniform(k_adj, (N_NODES, N_NODES)) > 0.7).astype(jnp.float32)
    e2n = (jax.random.uniform(k_e2n, (N_NODES, N_EDGES)) > 0.8).astype(jnp.float32)
    # subgraph pooling: first half of nodes -> graph 0, second half -> graph 1
    subg = jnp.zeros((N_GRAPHS, N_NODES), jnp.float32)
    subg = subg.at[0, : N_NODES // 2].set(1.0)
    subg = subg.at[1, N_NODES // 2:].set(1.0)

    labels = jax.random.normal(k_lbl, (N_GRAPHS, 1), jnp.float32)

    params = init_params(k_par, NUM_NODE_FEATS, NUM_EDGE_FEATS,
                         LATENT_DIM, OUT_DIM, HIDDEN)

    forward = make_regressor_forward(params, max_lv=MAX_LV)
    pred, mae, mse = forward(node_feat, edge_feat, n2n, e2n, subg, labels)
    jax.block_until_ready((pred, mae, mse))

    # correctness check against pure-JAX reference
    pred_r, mae_r, mse_r = regressor_ref(node_feat, edge_feat, n2n, e2n, subg,
                                         labels, params, max_lv=MAX_LV)
    np.testing.assert_allclose(np.asarray(pred), np.asarray(pred_r),
                               rtol=1e-4, atol=1e-4)
    np.testing.assert_allclose(float(mae), float(mae_r), rtol=1e-4, atol=1e-4)
    np.testing.assert_allclose(float(mse), float(mse_r), rtol=1e-4, atol=1e-4)

    print("KERNEL_OK")
</pallas_src>

<mosaic_0001>
module attributes {stable_mosaic.version = 11 : i64} {
  func.func @regressor_kernel(%arg0: memref<16x16xf32, #tpu.memory_space<vmem>>, %arg1: memref<24x16xf32, #tpu.memory_space<vmem>>, %arg2: memref<16x16xbf16, #tpu.memory_space<vmem>>, %arg3: memref<16x24xbf16, #tpu.memory_space<vmem>>, %arg4: memref<8x16xbf16, #tpu.memory_space<vmem>>, %arg5: memref<8x128xf32, #tpu.memory_space<vmem>>, %arg6: memref<536x128xf32, #tpu.memory_space<vmem>>, %arg7: memref<16x128xf32, #tpu.memory_space<vmem>>) attributes {dimension_semantics = [], scalar_prefetch = 0 : i64, scratch_operands = 0 : i64, tpu.core_type = #tpu.core_type<tc>} {
    %c0 = arith.constant 0 : index
    %c0_0 = arith.constant 0 : index
    %0 = vector.load %arg0[%c0, %c0_0] : memref<16x16xf32, #tpu.memory_space<vmem>>, vector<16x16xf32>
    %c0_1 = arith.constant 0 : index
    %c0_2 = arith.constant 0 : index
    %1 = vector.load %arg1[%c0_1, %c0_2] : memref<24x16xf32, #tpu.memory_space<vmem>>, vector<24x16xf32>
    %c0_3 = arith.constant 0 : index
    %c0_4 = arith.constant 0 : index
    %2 = vector.load %arg2[%c0_3, %c0_4] : memref<16x16xbf16, #tpu.memory_space<vmem>>, vector<16x16xbf16>
    %3 = arith.extf %2 : vector<16x16xbf16> to vector<16x16xf32>
    %c0_5 = arith.constant 0 : index
    %c0_6 = arith.constant 0 : index
    %4 = vector.load %arg3[%c0_5, %c0_6] : memref<16x24xbf16, #tpu.memory_space<vmem>>, vector<16x24xbf16>
    %5 = arith.extf %4 : vector<16x24xbf16> to vector<16x24xf32>
    %c0_7 = arith.constant 0 : index
    %c0_8 = arith.constant 0 : index
    %6 = vector.load %arg4[%c0_7, %c0_8] : memref<8x16xbf16, #tpu.memory_space<vmem>>, vector<8x16xbf16>
    %7 = arith.extf %6 : vector<8x16xbf16> to vector<8x16xf32>
    %c0_9 = arith.constant 0 : index
    %c0_10 = arith.constant 0 : index
    %8 = vector.load %arg5[%c0_9, %c0_10] : memref<8x128xf32, #tpu.memory_space<vmem>>, vector<8x128xf32>
    %c0_11 = arith.constant 0 : index
    %c0_12 = arith.constant 0 : index
    %9 = vector.load %arg6[%c0_11, %c0_12] : memref<536x128xf32, #tpu.memory_space<vmem>>, vector<16x128xf32>
    %c16 = arith.constant 16 : index
    %c0_13 = arith.constant 0 : index
    %10 = vector.load %arg6[%c16, %c0_13] : memref<536x128xf32, #tpu.memory_space<vmem>>, vector<128x128xf32>
    %c144 = arith.constant 144 : index
    %c0_14 = arith.constant 0 : index
    %11 = vector.load %arg6[%c144, %c0_14] : memref<536x128xf32, #tpu.memory_space<vmem>>, vector<128x128xf32>
    %c272 = arith.constant 272 : index
    %c0_15 = arith.constant 0 : index
    %12 = vector.load %arg6[%c272, %c0_15] : memref<536x128xf32, #tpu.memory_space<vmem>>, vector<128x128xf32>
    %c400 = arith.constant 400 : index
    %c0_16 = arith.constant 0 : index
    %13 = vector.load %arg6[%c400, %c0_16] : memref<536x128xf32, #tpu.memory_space<vmem>>, vector<128x128xf32>
    %c528 = arith.constant 528 : index
    %c0_17 = arith.constant 0 : index
    %14 = vector.load %arg6[%c528, %c0_17] : memref<536x128xf32, #tpu.memory_space<vmem>>, vector<1x128xf32>
    %c529 = arith.constant 529 : index
    %c0_18 = arith.constant 0 : index
    %15 = vector.load %arg6[%c529, %c0_18] : memref<536x128xf32, #tpu.memory_space<vmem>>, vector<1x128xf32>
    %c530 = arith.constant 530 : index
    %c0_19 = arith.constant 0 : index
    %16 = vector.load %arg6[%c530, %c0_19] : memref<536x128xf32, #tpu.memory_space<vmem>>, vector<1x128xf32>
    %c531 = arith.constant 531 : index
    %c0_20 = arith.constant 0 : index
    %17 = vector.load %arg6[%c531, %c0_20] : memref<536x128xf32, #tpu.memory_space<vmem>>, vector<1x128xf32>
    %c532 = arith.constant 532 : index
    %c0_21 = arith.constant 0 : index
    %18 = vector.load %arg6[%c532, %c0_21] : memref<536x128xf32, #tpu.memory_space<vmem>>, vector<1x128xf32>
    %c533 = arith.constant 533 : index
    %c0_22 = arith.constant 0 : index
    %19 = vector.load %arg6[%c533, %c0_22] : memref<536x128xf32, #tpu.memory_space<vmem>>, vector<1x128xf32>
    %cst = arith.constant dense<0.000000e+00> : vector<16x16xf32>
    %20 = tpu.matmul %5, %1, %cst {dimension_numbers = #tpu.dot_dimension_numbers<[1], [0], [0], [1], [0, 0, 1, 1], [], []>} : vector<16x24xf32>, vector<24x16xf32>, vector<16x16xf32> -> vector<16x16xf32>
    %cst_23 = arith.constant dense<0.000000e+00> : vector<16xf32>
    %21 = vector.multi_reduction <add>, %5, %cst_23 [1] : vector<16x24xf32> to vector<16xf32>
    %22 = vector.shape_cast %21 : vector<16xf32> to vector<16x1xf32>
    %23 = arith.addf %0, %20 : vector<16x16xf32>
    %cst_24 = arith.constant dense<0.000000e+00> : vector<16x128xf32>
    %24 = tpu.matmul %23, %9, %cst_24 {dimension_numbers = #tpu.dot_dimension_numbers<[1], [0], [0], [1], [0, 0, 1, 1], [], []>} : vector<16x16xf32>, vector<16x128xf32>, vector<16x128xf32> -> vector<16x128xf32>
    %25 = vector.broadcast %14 : vector<1x128xf32> to vector<16x128xf32>
    %26 = arith.addf %24, %25 : vector<16x128xf32>
    %27 = vector.broadcast %22 : vector<16x1xf32> to vector<16x128xf32>
    %28 = vector.broadcast %15 : vector<1x128xf32> to vector<16x128xf32>
    %29 = arith.mulf %27, %28 : vector<16x128xf32>
    %30 = arith.addf %26, %29 : vector<16x128xf32>
    %cst_25 = arith.constant 0.000000e+00 : f32
    %31 = vector.broadcast %cst_25 : f32 to vector<16x128xf32>
    %32 = arith.maximumf %30, %31 : vector<16x128xf32>
    %33 = vector.shape_cast %16 : vector<1x128xf32> to vector<1x128xf32>
    %34 = vector.broadcast %33 : vector<1x128xf32> to vector<16x128xf32>
    %35 = arith.addf %30, %34 : vector<16x128xf32>
    %cst_26 = arith.constant dense<0.000000e+00> : vector<16x128xf32>
    %36 = tpu.matmul %3, %32, %cst_26 {dimension_numbers = #tpu.dot_dimension_numbers<[1], [0], [0], [1], [0, 0, 1, 1], [], []>} : vector<16x16xf32>, vector<16x128xf32>, vector<16x128xf32> -> vector<16x128xf32>
    %cst_27 = arith.constant dense<0.000000e+00> : vector<16x128xf32>
    %37 = tpu.matmul %36, %10, %cst_27 {dimension_numbers = #tpu.dot_dimension_numbers<[1], [0], [0], [1], [0, 0, 1, 1], [], []>} : vector<16x128xf32>, vector<128x128xf32>, vector<16x128xf32> -> vector<16x128xf32>
    %38 = arith.addf %37, %35 : vector<16x128xf32>
    %cst_28 = arith.constant 0.000000e+00 : f32
    %39 = vector.broadcast %cst_28 : f32 to vector<16x128xf32>
    %40 = arith.maximumf %38, %39 : vector<16x128xf32>
    %cst_29 = arith.constant dense<0.000000e+00> : vector<16x128xf32>
    %41 = tpu.matmul %3, %40, %cst_29 {dimension_numbers = #tpu.dot_dimension_numbers<[1], [0], [0], [1], [0, 0, 1, 1], [], []>} : vector<16x16xf32>, vector<16x128xf32>, vector<16x128xf32> -> vector<16x128xf32>
    %cst_30 = arith.constant dense<0.000000e+00> : vector<16x128xf32>
    %42 = tpu.matmul %41, %10, %cst_30 {dimension_numbers = #tpu.dot_dimension_numbers<[1], [0], [0], [1], [0, 0, 1, 1], [], []>} : vector<16x128xf32>, vector<128x128xf32>, vector<16x128xf32> -> vector<16x128xf32>
    %43 = arith.addf %42, %35 : vector<16x128xf32>
    %cst_31 = arith.constant 0.000000e+00 : f32
    %44 = vector.broadcast %cst_31 : f32 to vector<16x128xf32>
    %45 = arith.maximumf %43, %44 : vector<16x128xf32>
    %cst_32 = arith.constant dense<0.000000e+00> : vector<16x128xf32>
    %46 = tpu.matmul %3, %45, %cst_32 {dimension_numbers = #tpu.dot_dimension_numbers<[1], [0], [0], [1], [0, 0, 1, 1], [], []>} : vector<16x16xf32>, vector<16x128xf32>, vector<16x128xf32> -> vector<16x128xf32>
    %cst_33 = arith.constant dense<0.000000e+00> : vector<16x128xf32>
    %47 = tpu.matmul %46, %10, %cst_33 {dimension_numbers = #tpu.dot_dimension_numbers<[1], [0], [0], [1], [0, 0, 1, 1], [], []>} : vector<16x128xf32>, vector<128x128xf32>, vector<16x128xf32> -> vector<16x128xf32>
    %48 = arith.addf %47, %35 : vector<16x128xf32>
    %cst_34 = arith.constant 0.000000e+00 : f32
    %49 = vector.broadcast %cst_34 : f32 to vector<16x128xf32>
    %50 = arith.maximumf %48, %49 : vector<16x128xf32>
    %cst_35 = arith.constant dense<0.000000e+00> : vector<16x128xf32>
    %51 = tpu.matmul %50, %11, %cst_35 {dimension_numbers = #tpu.dot_dimension_numbers<[1], [0], [0], [1], [0, 0, 1, 1], [], []>} : vector<16x128xf32>, vector<128x128xf32>, vector<16x128xf32> -> vector<16x128xf32>
    %52 = vector.broadcast %17 : vector<1x128xf32> to vector<16x128xf32>
    %53 = arith.addf %51, %52 : vector<16x128xf32>
    %cst_36 = arith.constant 0.000000e+00 : f32
    %54 = vector.broadcast %cst_36 : f32 to vector<16x128xf32>
    %55 = arith.maximumf %53, %54 : vector<16x128xf32>
    %cst_37 = arith.constant dense<0.000000e+00> : vector<8x128xf32>
    %56 = tpu.matmul %7, %55, %cst_37 {dimension_numbers = #tpu.dot_dimension_numbers<[1], [0], [0], [1], [0, 0, 1, 1], [], []>} : vector<8x16xf32>, vector<16x128xf32>, vector<8x128xf32> -> vector<8x128xf32>
    %cst_38 = arith.constant 0.000000e+00 : f32
    %57 = vector.broadcast %cst_38 : f32 to vector<8x128xf32>
    %58 = arith.maximumf %56, %57 : vector<8x128xf32>
    %cst_39 = arith.constant dense<0.000000e+00> : vector<8x128xf32>
    %59 = tpu.matmul %58, %12, %cst_39 {dimension_numbers = #tpu.dot_dimension_numbers<[1], [0], [0], [1], [0, 0, 1, 1], [], []>} : vector<8x128xf32>, vector<128x128xf32>, vector<8x128xf32> -> vector<8x128xf32>
    %60 = vector.broadcast %18 : vector<1x128xf32> to vector<8x128xf32>
    %61 = arith.addf %59, %60 : vector<8x128xf32>
    %cst_40 = arith.constant 0.000000e+00 : f32
    %62 = vector.broadcast %cst_40 : f32 to vector<8x128xf32>
    %63 = arith.maximumf %61, %62 : vector<8x128xf32>
    %cst_41 = arith.constant dense<0.000000e+00> : vector<8x128xf32>
    %64 = tpu.matmul %63, %13, %cst_41 {dimension_numbers = #tpu.dot_dimension_numbers<[1], [0], [0], [1], [0, 0, 1, 1], [], []>} : vector<8x128xf32>, vector<128x128xf32>, vector<8x128xf32> -> vector<8x128xf32>
    %65 = vector.broadcast %19 : vector<1x128xf32> to vector<8x128xf32>
    %66 = arith.addf %64, %65 : vector<8x128xf32>
    %67 = tpu.iota {dimensions = array<i32: 0>} : vector<8x128xi32>
    %c2_i32 = arith.constant 2 : i32
    %68 = vector.broadcast %c2_i32 : i32 to vector<8x128xi32>
    %69 = arith.cmpi slt, %67, %68 : vector<8x128xi32>
    %70 = arith.subf %66, %8 : vector<8x128xf32>
    %cst_42 = arith.constant 0.000000e+00 : f32
    %71 = vector.broadcast %cst_42 : f32 to vector<8x128xf32>
    %72 = arith.select %69, %70, %71 : vector<8x128xi1>, vector<8x128xf32>
    %73 = arith.mulf %72, %72 : vector<8x128xf32>
    %74 = vector.shape_cast %73 : vector<8x128xf32> to vector<1x8x128xf32>
    %cst_43 = arith.constant dense<0.000000e+00> : vector<1xf32>
    %75 = vector.multi_reduction <add>, %74, %cst_43 [1, 2] : vector<1x8x128xf32> to vector<1xf32>
    %76 = vector.shape_cast %75 : vector<1xf32> to vector<1x1x1xf32>
    %77 = vector.extract %76[0, 0, 0] : f32 from vector<1x1x1xf32>
    %cst_44 = arith.constant 2.000000e+00 : f32
    %78 = arith.divf %77, %cst_44 : f32
    %79 = math.absf %72 : vector<8x128xf32>
    %80 = vector.shape_cast %79 : vector<8x128xf32> to vector<1x8x128xf32>
    %cst_45 = arith.constant dense<0.000000e+00> : vector<1xf32>
    %81 = vector.multi_reduction <add>, %80, %cst_45 [1, 2] : vector<1x8x128xf32> to vector<1xf32>
    %82 = vector.shape_cast %81 : vector<1xf32> to vector<1x1x1xf32>
    %83 = vector.extract %82[0, 0, 0] : f32 from vector<1x1x1xf32>
    %cst_46 = arith.constant 2.000000e+00 : f32
    %84 = arith.divf %83, %cst_46 : f32
    %c0_47 = arith.constant 0 : index
    %c0_48 = arith.constant 0 : index
    %85 = vector.load %arg7[%c0_47, %c0_48] : memref<16x128xf32, #tpu.memory_space<vmem>>, vector<8x128xf32>
    tpu.vector_store %arg7[%c0_47, %c0_48], %66 {strides = array<i32>} : memref<16x128xf32, #tpu.memory_space<vmem>>, vector<8x128xf32>,
    %86 = tpu.iota {dimensions = array<i32: 0>} : vector<8x128xi32>
    %c0_i32 = arith.constant 0 : i32
    %87 = vector.broadcast %c0_i32 : i32 to vector<8x128xi32>
    %88 = arith.cmpi eq, %86, %87 : vector<8x128xi32>
    %c1_i32 = arith.constant 1 : i32
    %89 = vector.broadcast %c1_i32 : i32 to vector<8x128xi32>
    %90 = arith.cmpi eq, %86, %89 : vector<8x128xi32>
    %cst_49 = arith.constant 0.000000e+00 : f32
    %91 = vector.broadcast %78 : f32 to vector<8x128xf32>
    %92 = vector.broadcast %cst_49 : f32 to vector<8x128xf32>
    %93 = arith.select %90, %91, %92 : vector<8x128xi1>, vector<8x128xf32>
    %94 = vector.broadcast %84 : f32 to vector<8x128xf32>
    %95 = arith.select %88, %94, %93 : vector<8x128xi1>, vector<8x128xf32>
    %c8 = arith.constant 8 : index
    %c0_50 = arith.constant 0 : index
    %96 = vector.load %arg7[%c8, %c0_50] : memref<16x128xf32, #tpu.memory_space<vmem>>, vector<8x128xf32>
    tpu.vector_store %arg7[%c8, %c0_50], %95 {strides = array<i32>} : memref<16x128xf32, #tpu.memory_space<vmem>>, vector<8x128xf32>,
    return
  }
}

</mosaic_0001>

<llo_original>
// kernel: forward.1
$region0: #{forward.1}
  #allocation0 [shape = 'u32[]', space=smem, size = 0x4, offset = 0x4, fixed_abs, tag = 'smem constant byte address 0x4 - core index']
  #allocation1 [shape = 'u32[72,128]{1,0:T(1,128)}', space=vmem, size = 0x9000, scoped, tag = 'internal scratch']
  %s0 = inlined_call_operand.vmem [shape: f32[16,16], index: 0, kind: input, shape index: {}]
  %s1 = inlined_call_operand.vmem [shape: f32[24,16], index: 1, kind: input, shape index: {}]
  %s2 = inlined_call_operand.vmem [shape: bf16[16,16], index: 2, kind: input, shape index: {}]
  %s3 = inlined_call_operand.vmem [shape: bf16[16,24], index: 3, kind: input, shape index: {}]
  %s4 = inlined_call_operand.vmem [shape: bf16[8,16], index: 4, kind: input, shape index: {}]
  %s5 = inlined_call_operand.vmem [shape: f32[8,128], index: 5, kind: input, shape index: {}]
  %s6 = inlined_call_operand.hbm [shape: f32[536,128], index: 6, kind: input, shape index: {}]
  %s7 = inlined_call_operand.vmem [shape: f32[16,128], index: 7, kind: output, shape index: {}]
  %s8 = sld [smem:[#allocation0]]
  $region42: #{forward.1} parent=0
    _
  %s10 = ssub.s32 1, %s8
  %s11 = scalar_select 0, %s10, %s8
  $region1: #{forward.1} parent=0
    #allocation2 [shape = 'u8[274432]{0}', space=vmem, size = 0x43000, scoped, tag = 'input window, operand 6, single buffered']
    #allocation3 [shape = 's32[1]{0}', space=sflag, size = 0x4, scoped, tag = 'scoped memory for forward.1']
    %12 = vsyncpa [#allocation3], 0
    // Predicated region
    $region2: #{forward.1} parent=1 // pred_check
      _
    $region3: #{forward.1} parent=1 // pred_check_branch
      %14 = sbr.rel (0) target = $region5
    $region4: #{forward.1} parent=1 // pred_region
      _
    $region5: #{forward.1} parent=1 // pred_fallthru
      _
    // Predicated region
    $region6: #{forward.1} parent=1 // pred_check
      _
    $region7: #{forward.1} parent=1 // pred_check_branch
      %16 = sbr.rel (0) target = $region9
    $region8: #{forward.1} parent=1 // pred_region
      _
    $region9: #{forward.1} parent=1 // pred_fallthru
      _
    // Predicated region
    $region10: #{forward.1} parent=1 // pred_check
      _
    $region11: #{forward.1} parent=1 // pred_check_branch
      %18 = sbr.rel (0) target = $region13
    $region12: #{forward.1} parent=1 // pred_region
      _
    $region13: #{forward.1} parent=1 // pred_fallthru
      _
    // Predicated region
    $region14: #{forward.1} parent=1 // pred_check
      _
    $region15: #{forward.1} parent=1 // pred_check_branch
      %20 = sbr.rel (0) target = $region17
    $region16: #{forward.1} parent=1 // pred_region
      _
    $region17: #{forward.1} parent=1 // pred_fallthru
      _
    // Predicated region
    $region18: #{forward.1} parent=1 // pred_check
      _
    $region19: #{forward.1} parent=1 // pred_check_branch
      %22 = sbr.rel (0) target = $region21
    $region20: #{forward.1} parent=1 // pred_region
      _
    $region21: #{forward.1} parent=1 // pred_fallthru
      _
    // Predicated region
    $region22: #{forward.1} parent=1 // pred_check
      _
    $region23: #{forward.1} parent=1 // pred_check_branch
      %24 = sbr.rel (0) target = $region25
    $region24: #{forward.1} parent=1 // pred_region
      _
    $region25: #{forward.1} parent=1 // pred_fallthru
      _
    // Predicated region
    $region26: #{forward.1} parent=1 // pred_check
      _
    $region27: #{forward.1} parent=1 // pred_check_branch
      %26 = sbr.rel (0) target = $region29
    $region28: #{forward.1} parent=1 // pred_region
      %28 = vsyncadd [#allocation3], 0
      %s29 = sshll.u32 %s6, 4
      %s30 = int_to_ptr.hbm [resolvable:$true] %s29
      %s31 = sshll.u32 [#allocation2], 4
      %s32 = int_to_ptr.vmem [resolvable:$true] %s31
      %37 = dma.hbm_to_vmem [thread:$0]  %s30, 8576, %s32, [#allocation3], 128, 128, 8
    $region29: #{forward.1} parent=1 // pred_fallthru
      _
    // Predicated region
    $region30: #{forward.1} parent=1 // pred_check
      _
    $region31: #{forward.1} parent=1 // pred_check_branch
      %39 = sbr.rel (0) target = $region33
    $region32: #{forward.1} parent=1 // pred_region
      %41 = dma.done [#allocation3], 8576
    $region33: #{forward.1} parent=1 // pred_fallthru
      _
    %v42 = vld [vmem:[%s0] sm:$0xff]
    %v43 = vld [vmem:[%s0 + $0x8] sm:$0xff]
    %v44 = vld [vmem:[%s1] sm:$0xff]
    %v45 = vld [vmem:[%s1 + $0x8] sm:$0xff]
    %v46 = vld [vmem:[%s1 + $0x10] sm:$0xff]
    %v47 = vld [vmem:[%s2] sm:$0xf]
    %v48 = vld [vmem:[%s2 + $0x4] sm:$0xf]
    %v49 = vunpack.c.l.bf16 %v47
    %v50 = vunpack.c.l.bf16 %v48
    %v51 = vld [vmem:[%s3] sm:$0xf]
    %v52 = vld [vmem:[%s3 + $0x4] sm:$0xf]
    %v53 = vunpack.c.l.bf16 %v51
    %v54 = vunpack.c.l.bf16 %v52
    %v55 = vld [vmem:[%s4] sm:$0xf]
    %v56 = vunpack.c.l.bf16 %v55
    %v57 = vld [vmem:[%s5] sm:$0xff]
    %v58 = vld [vmem:[#allocation2] sm:$0xff]
    %v59 = vld [vmem:[#allocation2 + $0x8] sm:$0xff]
    %v60 = vld [vmem:[#allocation2 + $0x10] sm:$0xff]
    %v61 = vld [vmem:[#allocation2 + $0x18] sm:$0xff]
    %v62 = vld [vmem:[#allocation2 + $0x20] sm:$0xff]
    %v63 = vld [vmem:[#allocation2 + $0x28] sm:$0xff]
    %v64 = vld [vmem:[#allocation2 + $0x30] sm:$0xff]
    %v65 = vld [vmem:[#allocation2 + $0x38] sm:$0xff]
    %v66 = vld [vmem:[#allocation2 + $0x40] sm:$0xff]
    %v67 = vld [vmem:[#allocation2 + $0x48] sm:$0xff]
    %v68 = vld [vmem:[#allocation2 + $0x50] sm:$0xff]
    %v69 = vld [vmem:[#allocation2 + $0x58] sm:$0xff]
    %v70 = vld [vmem:[#allocation2 + $0x60] sm:$0xff]
    %v71 = vld [vmem:[#allocation2 + $0x68] sm:$0xff]
    %v72 = vld [vmem:[#allocation2 + $0x70] sm:$0xff]
    %v73 = vld [vmem:[#allocation2 + $0x78] sm:$0xff]
    %v74 = vld [vmem:[#allocation2 + $0x80] sm:$0xff]
    %v75 = vld [vmem:[#allocation2 + $0x88] sm:$0xff]
    %v76 = vld [vmem:[#allocation2 + $0x90] sm:$0xff]
    %v77 = vld [vmem:[#allocation2 + $0x98] sm:$0xff]
    %v78 = vld [vmem:[#allocation2 + $0xa0] sm:$0xff]
    %v79 = vld [vmem:[#allocation2 + $0xa8] sm:$0xff]
    %v80 = vld [vmem:[#allocation2 + $0xb0] sm:$0xff]
    %v81 = vld [vmem:[#allocation2 + $0xb8] sm:$0xff]
    %v82 = vld [vmem:[#allocation2 + $0xc0] sm:$0xff]
    %v83 = vld [vmem:[#allocation2 + $0xc8] sm:$0xff]
    %v84 = vld [vmem:[#allocation2 + $0xd0] sm:$0xff]
    %v85 = vld [vmem:[#allocation2 + $0xd8] sm:$0xff]
    %v86 = vld [vmem:[#allocation2 + $0xe0] sm:$0xff]
    %v87 = vld [vmem:[#allocation2 + $0xe8] sm:$0xff]
    %v88 = vld [vmem:[#allocation2 + $0xf0] sm:$0xff]
    %v89 = vld [vmem:[#allocation2 + $0xf8] sm:$0xff]
    %v90 = vld [vmem:[#allocation2 + $0x100] sm:$0xff]
    %v91 = vld [vmem:[#allocation2 + $0x108] sm:$0xff]
    %v92 = vld [vmem:[#allocation2 + $0x110] sm:$0xff]
    %v93 = vld [vmem:[#allocation2 + $0x118] sm:$0xff]
    %v94 = vld [vmem:[#allocation2 + $0x120] sm:$0xff]
    %v95 = vld [vmem:[#allocation2 + $0x128] sm:$0xff]
    %v96 = vld [vmem:[#allocation2 + $0x130] sm:$0xff]
    %v97 = vld [vmem:[#allocation2 + $0x138] sm:$0xff]
    %v98 = vld [vmem:[#allocation2 + $0x140] sm:$0xff]
    %v99 = vld [vmem:[#allocation2 + $0x148] sm:$0xff]
    %v100 = vld [vmem:[#allocation2 + $0x150] sm:$0xff]
    %v101 = vld [vmem:[#allocation2 + $0x158] sm:$0xff]
    %v102 = vld [vmem:[#allocation2 + $0x160] sm:$0xff]
    %v103 = vld [vmem:[#allocation2 + $0x168] sm:$0xff]
    %v104 = vld [vmem:[#allocation2 + $0x170] sm:$0xff]
    %v105 = vld [vmem:[#allocation2 + $0x178] sm:$0xff]
    %v106 = vld [vmem:[#allocation2 + $0x180] sm:$0xff]
    %v107 = vld [vmem:[#allocation2 + $0x188] sm:$0xff]
    %v108 = vld [vmem:[#allocation2 + $0x190] sm:$0xff]
    %v109 = vld [vmem:[#allocation2 + $0x198] sm:$0xff]
    %v110 = vld [vmem:[#allocation2 + $0x1a0] sm:$0xff]
    %v111 = vld [vmem:[#allocation2 + $0x1a8] sm:$0xff]
    %v112 = vld [vmem:[#allocation2 + $0x1b0] sm:$0xff]
    %v113 = vld [vmem:[#allocation2 + $0x1b8] sm:$0xff]
    %v114 = vld [vmem:[#allocation2 + $0x1c0] sm:$0xff]
    %v115 = vld [vmem:[#allocation2 + $0x1c8] sm:$0xff]
    %v116 = vld [vmem:[#allocation2 + $0x1d0] sm:$0xff]
    %v117 = vld [vmem:[#allocation2 + $0x1d8] sm:$0xff]
    %v118 = vld [vmem:[#allocation2 + $0x1e0] sm:$0xff]
    %v119 = vld [vmem:[#allocation2 + $0x1e8] sm:$0xff]
    %v120 = vld [vmem:[#allocation2 + $0x1f0] sm:$0xff]
    %v121 = vld [vmem:[#allocation2 + $0x1f8] sm:$0xff]
    %v122 = vld [vmem:[#allocation2 + $0x200] sm:$0xff]
    %v123 = vld [vmem:[#allocation2 + $0x208] sm:$0xff]
    %v124 = vld [vmem:[#allocation2 + $0x210] sm:$0x1]
    %v125 = vld [vmem:[#allocation2 + $0x211] sm:$0x1]
    %v126 = vld [vmem:[#allocation2 + $0x212] sm:$0x1]
    %v127 = vld [vmem:[#allocation2 + $0x213] sm:$0x1]
    %v128 = vld [vmem:[#allocation2 + $0x214] sm:$0x1]
    %v129 = vld [vmem:[#allocation2 + $0x215] sm:$0x1]
    %vm130 = vcmask 195584
    %v132 = vsel %vm130, %v53, 0
    %v135 = vsel %vm130, %v54, 0
    %137 = vmatpush.msra.mxu0 0.0
    %138 = vmatpush.msra.mxu0 0.0
    %139 = vmatpush.msra.mxu0 0.0
    %140 = vmatpush.msra.mxu0 0.0
    %141 = vmatpush.msra.mxu0 0.0
    %142 = vmatpush.msra.mxu0 0.0
    %143 = vmatpush.msra.mxu0 0.0
    %144 = vmatpush.msra.mxu0 0.0
    %145 = vmatpush.msra.mxu0 0.0
    %146 = vmatpush.msra.mxu0 0.0
    %147 = vmatpush.msra.mxu0 0.0
    %148 = vmatpush.msra.mxu0 0.0
    %149 = vmatpush.msra.mxu0 0.0
    %150 = vmatpush.msra.mxu0 %v46
    %151 = vmatpush.msra.mxu0 %v45
    %152 = vmatpush.msra.mxu0 %v44
    %153 = vmatmul.f32.gmra.mxu0 %v132
    %v154 = vpop.f32.mrf.mxu0
    %v155 = vadd.f32 0.0, %v154
    %156 = vmatmul.f32.gmra.mxu0 %v135
    %v157 = vpop.f32.mrf.mxu0
    %v158 = vadd.f32 0.0, %v157
    %159 = vdwg.mxu0
    %v160 = vsel %vm130, %v53, 0.0
    %161 = vadd.xlane.f32.xlu0 %v160
    %v162 = vpop.xlane.xlu0 %161
    %v163 = vsel %vm130, %v54, 0.0
    %164 = vadd.xlane.f32.xlu0 %v163
    %v165 = vpop.xlane.xlu0 %164
    %v166 = vadd.f32 %v42, %v155
    %v167 = vadd.f32 %v43, %v158
    %v168 = vperm.slane %v124, 0
    %vm169 = vcmask 130048
    %v171 = vsel %vm169, %v166, 0
    %v174 = vsel %vm169, %v167, 0
    %176 = vmatpush.msra.mxu0 0.0
    %177 = vmatpush.msra.mxu0 0.0
    %178 = vmatpush.msra.mxu0 0.0
    %179 = vmatpush.msra.mxu0 0.0
    %180 = vmatpush.msra.mxu0 0.0
    %181 = vmatpush.msra.mxu0 0.0
    %182 = vmatpush.msra.mxu0 0.0
    %183 = vmatpush.msra.mxu0 0.0
    %184 = vmatpush.msra.mxu0 0.0
    %185 = vmatpush.msra.mxu0 0.0
    %186 = vmatpush.msra.mxu0 0.0
    %187 = vmatpush.msra.mxu0 0.0
    %188 = vmatpush.msra.mxu0 0.0
    %189 = vmatpush.msra.mxu0 0.0
    %190 = vmatpush.msra.mxu0 %v59
    %191 = vmatpush.msra.mxu0 %v58
    %192 = vmatmul.f32.gmra.mxu0 %v171
    %v193 = vpop.f32.mrf.mxu0
    %v194 = vadd.f32 %v168, %v193
    %195 = vmatmul.f32.gmra.mxu0 %v174
    %v196 = vpop.f32.mrf.mxu0
    %v197 = vadd.f32 %v168, %v196
    %198 = vdwg.mxu0
    %v199 = vperm.slane %v125, 0
    %v200 = vmul.f32 %v162, %v199
    %v201 = vmul.f32 %v165, %v199
    %v202 = vadd.f32 %v194, %v200
    %v203 = vadd.f32 %v197, %v201
    %v204 = vmax.f32 %v202, 0.0
    %v205 = vmax.f32 %v203, 0.0
    %v206 = vperm.slane %v126, 0
    %v207 = vadd.f32 %v202, %v206
    %v208 = vadd.f32 %v203, %v206
    %v210 = vsel %vm169, %v49, 0
    %v213 = vsel %vm169, %v50, 0
    %215 = vmatpush.msra.mxu0 0.0
    %216 = vmatpush.msra.mxu0 0.0
    %217 = vmatpush.msra.mxu0 0.0
    %218 = vmatpush.msra.mxu0 0.0
    %219 = vmatpush.msra.mxu0 0.0
    %220 = vmatpush.msra.mxu0 0.0
    %221 = vmatpush.msra.mxu0 0.0
    %222 = vmatpush.msra.mxu0 0.0
    %223 = vmatpush.msra.mxu0 0.0
    %224 = vmatpush.msra.mxu0 0.0
    %225 = vmatpush.msra.mxu0 0.0
    %226 = vmatpush.msra.mxu0 0.0
    %227 = vmatpush.msra.mxu0 0.0
    %228 = vmatpush.msra.mxu0 0.0
    %229 = vmatpush.msra.mxu0 %v205
    %230 = vmatpush.msra.mxu0 %v204
    %231 = vmatmul.f32.gmra.mxu0 %v210
    %v232 = vpop.f32.mrf.mxu0
    %v233 = vadd.f32 0.0, %v232
    %234 = vmatmul.f32.gmra.mxu0 %v213
    %v235 = vpop.f32.mrf.mxu0
    %v236 = vadd.f32 0.0, %v235
    %237 = vdwg.mxu0
    %238 = vmatpush.msra.mxu0 %v75
    %239 = vmatpush.msra.mxu0 %v74
    %240 = vmatpush.msra.mxu0 %v73
    %241 = vmatpush.msra.mxu0 %v72
    %242 = vmatpush.msra.mxu0 %v71
    %243 = vmatpush.msra.mxu0 %v70
    %244 = vmatpush.msra.mxu0 %v69
    %245 = vmatpush.msra.mxu0 %v68
    %246 = vmatpush.msra.mxu0 %v67
    %247 = vmatpush.msra.mxu0 %v66
    %248 = vmatpush.msra.mxu0 %v65
    %249 = vmatpush.msra.mxu0 %v64
    %250 = vmatpush.msra.mxu0 %v63
    %251 = vmatpush.msra.mxu0 %v62
    %252 = vmatpush.msra.mxu0 %v61
    %253 = vmatpush.msra.mxu0 %v60
    %254 = vmatmul.f32.gmra.mxu0 %v233
    %v255 = vpop.f32.mrf.mxu0
    %v256 = vadd.f32 %v207, %v255
    %257 = vmatmul.f32.gmra.mxu0 %v236
    %v258 = vpop.f32.mrf.mxu0
    %v259 = vadd.f32 %v208, %v258
    %260 = vdwg.mxu0
    %v261 = vmax.f32 %v256, 0.0
    %v262 = vmax.f32 %v259, 0.0
    %263 = vmatpush.msra.mxu0 0.0
    %264 = vmatpush.msra.mxu0 0.0
    %265 = vmatpush.msra.mxu0 0.0
    %266 = vmatpush.msra.mxu0 0.0
    %267 = vmatpush.msra.mxu0 0.0
    %268 = vmatpush.msra.mxu0 0.0
    %269 = vmatpush.msra.mxu0 0.0
    %270 = vmatpush.msra.mxu0 0.0
    %271 = vmatpush.msra.mxu0 0.0
    %272 = vmatpush.msra.mxu0 0.0
    %273 = vmatpush.msra.mxu0 0.0
    %274 = vmatpush.msra.mxu0 0.0
    %275 = vmatpush.msra.mxu0 0.0
    %276 = vmatpush.msra.mxu0 0.0
    %277 = vmatpush.msra.mxu0 %v262
    %278 = vmatpush.msra.mxu0 %v261
    %279 = vmatmul.f32.gmra.mxu0 %v210
    %v280 = vpop.f32.mrf.mxu0
    %v281 = vadd.f32 0.0, %v280
    %282 = vmatmul.f32.gmra.mxu0 %v213
    %v283 = vpop.f32.mrf.mxu0
    %v284 = vadd.f32 0.0, %v283
    %285 = vdwg.mxu0
    %286 = vmatpush.msra.mxu0 %v75
    %287 = vmatpush.msra.mxu0 %v74
    %288 = vmatpush.msra.mxu0 %v73
    %289 = vmatpush.msra.mxu0 %v72
    %290 = vmatpush.msra.mxu0 %v71
    %291 = vmatpush.msra.mxu0 %v70
    %292 = vmatpush.msra.mxu0 %v69
    %293 = vmatpush.msra.mxu0 %v68
    %294 = vmatpush.msra.mxu0 %v67
    %295 = vmatpush.msra.mxu0 %v66
    %296 = vmatpush.msra.mxu0 %v65
    %297 = vmatpush.msra.mxu0 %v64
    %298 = vmatpush.msra.mxu0 %v63
    %299 = vmatpush.msra.mxu0 %v62
    %300 = vmatpush.msra.mxu0 %v61
    %301 = vmatpush.msra.mxu0 %v60
    %302 = vmatmul.f32.gmra.mxu0 %v281
    %v303 = vpop.f32.mrf.mxu0
    %v304 = vadd.f32 %v207, %v303
    %305 = vmatmul.f32.gmra.mxu0 %v284
    %v306 = vpop.f32.mrf.mxu0
    %v307 = vadd.f32 %v208, %v306
    %308 = vdwg.mxu0
    %v309 = vmax.f32 %v304, 0.0
    %v310 = vmax.f32 %v307, 0.0
    %311 = vmatpush.msra.mxu0 0.0
    %312 = vmatpush.msra.mxu0 0.0
    %313 = vmatpush.msra.mxu0 0.0
    %314 = vmatpush.msra.mxu0 0.0
    %315 = vmatpush.msra.mxu0 0.0
    %316 = vmatpush.msra.mxu0 0.0
    %317 = vmatpush.msra.mxu0 0.0
    %318 = vmatpush.msra.mxu0 0.0
    %319 = vmatpush.msra.mxu0 0.0
    %320 = vmatpush.msra.mxu0 0.0
    %321 = vmatpush.msra.mxu0 0.0
    %322 = vmatpush.msra.mxu0 0.0
    %323 = vmatpush.msra.mxu0 0.0
    %324 = vmatpush.msra.mxu0 0.0
    %325 = vmatpush.msra.mxu0 %v310
    %326 = vmatpush.msra.mxu0 %v309
    %327 = vmatmul.f32.gmra.mxu0 %v210
    %v328 = vpop.f32.mrf.mxu0
    %v329 = vadd.f32 0.0, %v328
    %330 = vmatmul.f32.gmra.mxu0 %v213
    %v331 = vpop.f32.mrf.mxu0
    %v332 = vadd.f32 0.0, %v331
    %333 = vdwg.mxu0
    %334 = vmatpush.msra.mxu0 %v75
    %335 = vmatpush.msra.mxu0 %v74
    %336 = vmatpush.msra.mxu0 %v73
    %337 = vmatpush.msra.mxu0 %v72
    %338 = vmatpush.msra.mxu0 %v71
    %339 = vmatpush.msra.mxu0 %v70
    %340 = vmatpush.msra.mxu0 %v69
    %341 = vmatpush.msra.mxu0 %v68
    %342 = vmatpush.msra.mxu0 %v67
    %343 = vmatpush.msra.mxu0 %v66
    %344 = vmatpush.msra.mxu0 %v65
    %345 = vmatpush.msra.mxu0 %v64
    %346 = vmatpush.msra.mxu0 %v63
    %347 = vmatpush.msra.mxu0 %v62
    %348 = vmatpush.msra.mxu0 %v61
    %349 = vmatpush.msra.mxu0 %v60
    %350 = vmatmul.f32.gmra.mxu0 %v329
    %v351 = vpop.f32.mrf.mxu0
    %v352 = vadd.f32 %v207, %v351
    %353 = vmatmul.f32.gmra.mxu0 %v332
    %v354 = vpop.f32.mrf.mxu0
    %v355 = vadd.f32 %v208, %v354
    %356 = vdwg.mxu0
    %v357 = vmax.f32 %v352, 0.0
    %v358 = vmax.f32 %v355, 0.0
    %v359 = vperm.slane %v127, 0
    %360 = vmatpush.msra.mxu0 %v91
    %361 = vmatpush.msra.mxu0 %v90
    %362 = vmatpush.msra.mxu0 %v89
    %363 = vmatpush.msra.mxu0 %v88
    %364 = vmatpush.msra.mxu0 %v87
    %365 = vmatpush.msra.mxu0 %v86
    %366 = vmatpush.msra.mxu0 %v85
    %367 = vmatpush.msra.mxu0 %v84
    %368 = vmatpush.msra.mxu0 %v83
    %369 = vmatpush.msra.mxu0 %v82
    %370 = vmatpush.msra.mxu0 %v81
    %371 = vmatpush.msra.mxu0 %v80
    %372 = vmatpush.msra.mxu0 %v79
    %373 = vmatpush.msra.mxu0 %v78
    %374 = vmatpush.msra.mxu0 %v77
    %375 = vmatpush.msra.mxu0 %v76
    %376 = vmatmul.f32.gmra.mxu0 %v357
    %v377 = vpop.f32.mrf.mxu0
    %v378 = vadd.f32 %v359, %v377
    %379 = vmatmul.f32.gmra.mxu0 %v358
    %v380 = vpop.f32.mrf.mxu0
    %v381 = vadd.f32 %v359, %v380
    %382 = vdwg.mxu0
    %v383 = vmax.f32 %v378, 0.0
    %v384 = vmax.f32 %v381, 0.0
    %v386 = vsel %vm169, %v56, 0
    %388 = vmatpush.msra.mxu0 0.0
    %389 = vmatpush.msra.mxu0 0.0
    %390 = vmatpush.msra.mxu0 0.0
    %391 = vmatpush.msra.mxu0 0.0
    %392 = vmatpush.msra.mxu0 0.0
    %393 = vmatpush.msra.mxu0 0.0
    %394 = vmatpush.msra.mxu0 0.0
    %395 = vmatpush.msra.mxu0 0.0
    %396 = vmatpush.msra.mxu0 0.0
    %397 = vmatpush.msra.mxu0 0.0
    %398 = vmatpush.msra.mxu0 0.0
    %399 = vmatpush.msra.mxu0 0.0
    %400 = vmatpush.msra.mxu0 0.0
    %401 = vmatpush.msra.mxu0 0.0
    %402 = vmatpush.msra.mxu0 %v384
    %403 = vmatpush.msra.mxu0 %v383
    %404 = vmatmul.f32.gmra.mxu0 %v386
    %v405 = vpop.f32.mrf.mxu0
    %v406 = vadd.f32 0.0, %v405
    %407 = vdwg.mxu0
    %v408 = vmax.f32 %v406, 0.0
    %v409 = vperm.slane %v128, 0
    %410 = vmatpush.msra.mxu0 %v107
    %411 = vmatpush.msra.mxu0 %v106
    %412 = vmatpush.msra.mxu0 %v105
    %413 = vmatpush.msra.mxu0 %v104
    %414 = vmatpush.msra.mxu0 %v103
    %415 = vmatpush.msra.mxu0 %v102
    %416 = vmatpush.msra.mxu0 %v101
    %417 = vmatpush.msra.mxu0 %v100
    %418 = vmatpush.msra.mxu0 %v99
    %419 = vmatpush.msra.mxu0 %v98
    %420 = vmatpush.msra.mxu0 %v97
    %421 = vmatpush.msra.mxu0 %v96
    %422 = vmatpush.msra.mxu0 %v95
    %423 = vmatpush.msra.mxu0 %v94
    %424 = vmatpush.msra.mxu0 %v93
    %425 = vmatpush.msra.mxu0 %v92
    %426 = vmatmul.f32.gmra.mxu0 %v408
    %v427 = vpop.f32.mrf.mxu0
    %v428 = vadd.f32 %v409, %v427
    %429 = vdwg.mxu0
    %v430 = vmax.f32 %v428, 0.0
    %v431 = vperm.slane %v129, 0
    %432 = vmatpush.msra.mxu0 %v123
    %433 = vmatpush.msra.mxu0 %v122
    %434 = vmatpush.msra.mxu0 %v121
    %435 = vmatpush.msra.mxu0 %v120
    %436 = vmatpush.msra.mxu0 %v119
    %437 = vmatpush.msra.mxu0 %v118
    %438 = vmatpush.msra.mxu0 %v117
    %439 = vmatpush.msra.mxu0 %v116
    %440 = vmatpush.msra.mxu0 %v115
    %441 = vmatpush.msra.mxu0 %v114
    %442 = vmatpush.msra.mxu0 %v113
    %443 = vmatpush.msra.mxu0 %v112
    %444 = vmatpush.msra.mxu0 %v111
    %445 = vmatpush.msra.mxu0 %v110
    %446 = vmatpush.msra.mxu0 %v109
    %447 = vmatpush.msra.mxu0 %v108
    %448 = vmatmul.f32.gmra.mxu0 %v430
    %v449 = vpop.f32.mrf.mxu0
    %v450 = vadd.f32 %v431, %v449
    %451 = vdwg.mxu0
    %v452 = vlaneseq
    %v453 = vshrl.u32 %v452, 7
    %vm454 = vcmp.lt.s32.totalorder %v453, 2
    %v455 = vsub.f32 %v450, %v57
    %v456 = vsel %vm454, %v455, 0.0
    %v457 = vmul.f32 %v456, %v456
    %458 = vadd.xlane.f32.xlu0 %v457
    %v459 = vpop.xlane.xlu0 %458
    %v460 = vrot.slane %v459, 4
    %v461 = vadd.f32 %v459, %v460
    %v462 = vrot.slane %v461, 2
    %v463 = vadd.f32 %v461, %v462
    %v464 = vrot.slane %v463, 1
    %v465 = vadd.f32 %v463, %v464
    %s466 = vtos %v465
    %v467 = vrcp.pop 2.0
    %v468 = vmul.f32 2.0, %v467
    %v469 = vsub.f32 1.0, %v468
    %v470 = vmul.f32 %v467, %v469
    %v471 = vadd.f32 %v467, %v470
    %vm472 = vweird.f32 %v467
    %v473 = vsel %vm472, %v467, %v471
    %s474 = vtos %v473
    %s475 = smul.f32 %s466, %s474
    %v476 = vand.u32 2147483647, %v456
    %477 = vadd.xlane.f32.xlu0 %v476
    %v478 = vpop.xlane.xlu0 %477
    %v479 = vrot.slane %v478, 4
    %v480 = vadd.f32 %v478, %v479
    %v481 = vrot.slane %v480, 2
    %v482 = vadd.f32 %v480, %v481
    %v483 = vrot.slane %v482, 1
    %v484 = vadd.f32 %v482, %v483
    %s485 = vtos %v484
    %v486 = vrcp.pop 2.0
    %v487 = vmul.f32 2.0, %v486
    %v488 = vsub.f32 1.0, %v487
    %v489 = vmul.f32 %v486, %v488
    %v490 = vadd.f32 %v486, %v489
    %vm491 = vweird.f32 %v486
    %v492 = vsel %vm491, %v486, %v490
    %s493 = vtos %v492
    %s494 = smul.f32 %s485, %s493
    %495 = vst [vmem:[%s7] sm:$0xff] %v450
    %vm496 = vcmp.eq.s32.totalorder %v453, 0
    %vm497 = vcmp.eq.s32.totalorder %v453, 1
    %v498 = vstv %s475
    %v499 = vsel %vm497, %v498, 0.0
    %v500 = vstv %s494
    %v501 = vsel %vm496, %v500, %v499
    %502 = vst [vmem:[%s7 + $0x8] sm:$0xff] %v501
    // Predicated region
    $region34: #{forward.1} parent=1 // pred_check
      _
    $region35: #{forward.1} parent=1 // pred_check_branch
      %504 = sbr.rel (0) target = $region37
    $region36: #{forward.1} parent=1 // pred_region
      _
    $region37: #{forward.1} parent=1 // pred_fallthru
      _
    // Predicated region
    $region38: #{forward.1} parent=1 // pred_check
      _
    $region39: #{forward.1} parent=1 // pred_check_branch
      %506 = sbr.rel (0) target = $region41
    $region40: #{forward.1} parent=1 // pred_region
      _
    $region41: #{forward.1} parent=1 // pred_fallthru
      _
    %507 = vsyncpa [#allocation3], 1

</llo_original>
